<compile_context>
chip_gen: v7x
topology: tpu7x:2x2x1
jax: 0.10.0
libtpu: 0.0.40
codegen_flags: <defaults>
</compile_context>

<pallas_src>
import math

import jax
import jax.numpy as jnp
from jax.experimental import pallas as pl
from jax.experimental.pallas import tpu as pltpu

_DEFAULT_TM = 512
_DEFAULT_TK = 2048


def _round_up(x, m):
    return (x + m - 1) // m * m


def plan_tiles(n, tm=None, tk=None):
    """Clamp/choose (tm, tk) and the padded row/col extents for an (n, n) adj."""
    tm = _DEFAULT_TM if tm is None else int(tm)
    tk = _DEFAULT_TK if tk is None else int(tk)

    rows8 = _round_up(n, 8)
    tm = min(tm, rows8)
    # Keep >= 2 row tiles whenever possible so both v7x TensorCores get work on
    # the "parallel" row axis (negligible extra grid overhead on v5e/v6e).
    if rows8 >= 16:
        tm = min(tm, _round_up(pl.cdiv(n, 2), 8))
    tm = _round_up(tm, 8)

    cols128 = _round_up(n, 128)
    tk = _round_up(min(tk, cols128), 128)

    n_rows_pad = _round_up(n, tm)
    n_cols_pad = _round_up(n, tk)
    return tm, tk, n_rows_pad, n_cols_pad


def prepare_adjacency(adj, *, tm=None, tk=None, dtype=jnp.bfloat16,
                      add_self_loops=True):
    """One fused pass over adj: cast (+ add identity) + pad to tile boundaries.

    Store the result in HBM and pass it to graph_convolution with
    adj_has_self_loops=True to skip the wrapper-side N^2 pass entirely.
    """
    n = adj.shape[0]
    assert adj.shape == (n, n)
    tm, tk, n_rows_pad, n_cols_pad = plan_tiles(n, tm, tk)
    a = adj.astype(dtype)
    if add_self_loops:
        a = a + jnp.eye(n, dtype=dtype)     # (adj + I) @ x == adj @ x + x
    return jnp.pad(a, ((0, n_rows_pad - n), (0, n_cols_pad - n)))


def _gcn_kernel(adj_ref, xk_ref, w_ref, invdeg_ref, b_ref, o_ref, acc_ref):
    """One (row-tile i, reduction-tile k) step of the GCN forward."""
    k = pl.program_id(1)

    @pl.when(k == 0)
    def _init():
        # Self term is folded into adj (adj + I), so start from zeros.
        acc_ref[...] = jnp.zeros_like(acc_ref)

    # support_tile += (adj + I)[i, k] @ x[k, :]   (MXU, f32 accumulation)
    acc_ref[...] += jnp.dot(
        adj_ref[...], xk_ref[...], preferred_element_type=jnp.float32)

    @pl.when(k == pl.num_programs(1) - 1)
    def _epilogue():
        support = acc_ref[...]                      # (tm, f_in_pad) f32
        inv_deg = invdeg_ref[...]                   # (tm, 1)        f32
        w = w_ref[...]                              # compute dtype (bf16/f32)
        f_in_pad = support.shape[-1]
        f_out_pad = o_ref.shape[-1]
        # Row-wise degree scaling commutes with the right-multiply by W; apply
        # it on the narrower feature width to minimize VPU work.  Epilogue
        # matmul runs in the compute dtype (bf16 by default) with f32 acc.
        if f_in_pad <= f_out_pad:
            lhs = (support * inv_deg).astype(w.dtype)
            out = jnp.dot(lhs, w, preferred_element_type=jnp.float32)
        else:
            lhs = support.astype(w.dtype)
            out = jnp.dot(lhs, w, preferred_element_type=jnp.float32) * inv_deg
        # Single lane-dense full-tile store.
        o_ref[...] = (out + b_ref[...]).astype(o_ref.dtype)


def graph_convolution(adj, x, weight, node_degs, bias=None, *,
                      tm=None, tk=None, compute_dtype=jnp.bfloat16,
                      out_dtype=jnp.float32, adj_has_self_loops=False):
    """GraphConvolution forward.

    adj:(N,N) (or pre-prepared padded adj with self-loops), x:(N,F_in),
    weight:(F_in,F_out), node_degs:(N,1), bias:(F_out,)  ->  (N, F_out).
    """
    n, f_in = x.shape
    f_in_w, f_out = weight.shape
    assert f_in_w == f_in
    assert node_degs.shape == (n, 1)
    if bias is None:
        bias = jnp.zeros((f_out,), jnp.float32)

    cdt = jnp.dtype(compute_dtype)
    tm, tk, n_rows_pad, n_cols_pad = plan_tiles(n, tm, tk)
    f_in_pad = _round_up(f_in, 128)     # lane-dense x slices / acc / weight K
    f_out_pad = _round_up(f_out, 128)   # lane-dense output / weight N

    # Adjacency: use as-is if already prepared, else one fused cast+I+pad pass.
    if (adj_has_self_loops and adj.dtype == cdt
            and adj.shape == (n_rows_pad, n_cols_pad)):
        adj_p = adj
    else:
        assert adj.shape == (n, n)
        a = adj.astype(cdt)
        if not adj_has_self_loops:
            a = a + jnp.eye(n, dtype=cdt)   # fold "+ input" self term
        adj_p = jnp.pad(a, ((0, n_rows_pad - n), (0, n_cols_pad - n)))

    x_p = jnp.pad(x.astype(cdt),
                  ((0, n_cols_pad - n), (0, f_in_pad - f_in)))
    # Precompute 1/deg on the host (no per-tile exact divide in the epilogue).
    invdeg_p = jnp.pad((1.0 / node_degs).astype(jnp.float32),
                       ((0, n_rows_pad - n), (0, 0)), constant_values=1.0)
    w_p = jnp.pad(weight.astype(cdt),
                  ((0, f_in_pad - f_in), (0, f_out_pad - f_out)))
    b_p = jnp.pad(bias.astype(jnp.float32),
                  (0, f_out_pad - f_out)).reshape(1, f_out_pad)

    grid = (pl.cdiv(n_rows_pad, tm), pl.cdiv(n_cols_pad, tk))

    # Double-buffered working-set estimate -> scoped VMEM limit, capped at
    # ~75% of physical VMEM (≈96 MiB on v5e/v6e, ≈48 MiB on v7x).
    try:
        phys_vmem = int(pltpu.get_tpu_info().vmem_capacity_bytes)
    except Exception:
        phys_vmem = 64 * 1024 * 1024
    vmem_cap = min(int(0.75 * phys_vmem), 100 * 1024 * 1024)
    cb = cdt.itemsize
    ob = jnp.dtype(out_dtype).itemsize
    est = (2 * tm * tk * cb                      # adj tile (double buffered)
           + 2 * tk * f_in_pad * cb              # x K-slice
           + 2 * f_in_pad * f_out_pad * cb       # weight (constant index)
           + 2 * tm * 128 * 4                    # inv_deg (lane-padded vregs)
           + 2 * 8 * f_out_pad * 4               # bias (sublane-padded vregs)
           + 2 * tm * f_out_pad * ob             # output tile
           + tm * f_in_pad * 4)                  # f32 accumulator scratch
    vmem_limit = int(min(max(int(1.5 * est), 32 * 1024 * 1024), vmem_cap))

    out = pl.pallas_call(
        _gcn_kernel,
        out_shape=jax.ShapeDtypeStruct((n_rows_pad, f_out_pad), out_dtype),
        grid_spec=pltpu.PrefetchScalarGridSpec(
            num_scalar_prefetch=0,
            grid=grid,
            in_specs=[
                pl.BlockSpec((tm, tk), lambda i, k: (i, k)),             # adj+I
                pl.BlockSpec((tk, f_in_pad), lambda i, k: (k, 0)),       # x
                pl.BlockSpec((f_in_pad, f_out_pad), lambda i, k: (0, 0)),# weight
                pl.BlockSpec((tm, 1), lambda i, k: (i, 0)),              # 1/deg
                pl.BlockSpec((1, f_out_pad), lambda i, k: (0, 0)),       # bias
            ],
            out_specs=pl.BlockSpec((tm, f_out_pad), lambda i, k: (i, 0)),
            scratch_shapes=[pltpu.VMEM((tm, f_in_pad), jnp.float32)],
        ),
        compiler_params=pltpu.CompilerParams(
            dimension_semantics=("parallel", "arbitrary"),
            vmem_limit_bytes=vmem_limit),
    )(adj_p, x_p, w_p, invdeg_p, b_p)

    return out[:n, :f_out]


def graph_convolution_ref(adj, x, weight, node_degs, bias):
    hi = jax.lax.Precision.HIGHEST
    support = jnp.dot(adj, x, precision=hi) + x
    node_linear = jnp.dot(support, weight, precision=hi)
    return node_linear / node_degs + bias[None, :]


if __name__ == "__main__":
    # Small-but-tiled shapes: N nodes, in/out feature widths.
    N, F_IN, F_OUT = 256, 64, 96

    key = jax.random.PRNGKey(0)
    k_x, k_adj, k_w, k_b = jax.random.split(key, 4)

    # Node features.
    x = jax.random.normal(k_x, (N, F_IN), dtype=jnp.float32)

    # Symmetric 0/1 adjacency, no self-loops.
    a_rand = jax.random.uniform(k_adj, (N, N))
    adj = (a_rand + a_rand.T > 1.0).astype(jnp.float32)
    adj = adj * (1.0 - jnp.eye(N, dtype=jnp.float32))

    # node_degs = degree + 1 (self term), shape (N, 1).
    node_degs = (jnp.sum(adj, axis=1, keepdims=True) + 1.0).astype(jnp.float32)

    # reset_parameters(): uniform(-stdv, stdv), stdv = 1/sqrt(out_features).
    stdv = 1.0 / math.sqrt(F_OUT)
    weight = jax.random.uniform(
        k_w, (F_IN, F_OUT), minval=-stdv, maxval=stdv, dtype=jnp.float32)
    bias = jax.random.uniform(
        k_b, (F_OUT,), minval=-stdv, maxval=stdv, dtype=jnp.float32)

    ref = graph_convolution_ref(adj, x, weight, node_degs, bias)

    # 1) Default path: bf16 adjacency/activations/weight, default tile planner
    #    (tm capped so the row grid has >= 2 tiles).
    out_bf16 = graph_convolution(adj, x, weight, node_degs, bias)
    out_bf16 = jax.block_until_ready(out_bf16)
    assert out_bf16.shape == (N, F_OUT)
    assert jnp.allclose(out_bf16, ref, atol=1e-2, rtol=1e-2), "bf16 mismatch"

    # 2) f32 compute path with small tiles so the K-reduction accumulator
    #    pipeline is exercised (grid = (2, 2)).
    out_f32 = graph_convolution(adj, x, weight, node_degs, bias,
                                tm=128, tk=128, compute_dtype=jnp.float32)
    out_f32 = jax.block_until_ready(out_f32)
    assert jnp.allclose(out_f32, ref, atol=2e-4, rtol=2e-4), "f32 mismatch"

    # 3) Pre-prepared adjacency (bf16, self-loops folded, tile-aligned) -> the
    #    wrapper performs no N^2 pass at all before the Pallas call.
    tm, tk, _, _ = plan_tiles(N)
    adj_hat = prepare_adjacency(adj, tm=tm, tk=tk, dtype=jnp.bfloat16)
    out_prep = graph_convolution(adj_hat, x, weight, node_degs, bias,
                                 tm=tm, tk=tk, adj_has_self_loops=True)
    out_prep = jax.block_until_ready(out_prep)
    assert jnp.allclose(out_prep, ref, atol=1e-2, rtol=1e-2), "prepared mismatch"

    print("KERNEL_OK")
</pallas_src>

<mosaic_0001>
module attributes {stable_mosaic.version = 11 : i64} {
  func.func @_gcn_kernel(%arg0: i32, %arg1: i32, %arg2: memref<128x256xbf16, #tpu.memory_space<vmem>>, %arg3: memref<256x128xbf16, #tpu.memory_space<vmem>>, %arg4: memref<128x128xbf16, #tpu.memory_space<vmem>>, %arg5: memref<128x1xf32, #tpu.memory_space<vmem>>, %arg6: memref<1x128xf32, #tpu.memory_space<vmem>>, %arg7: memref<128x128xf32, #tpu.memory_space<vmem>>, %arg8: memref<128x128xf32, #tpu.memory_space<vmem>>) attributes {dimension_semantics = [#tpu.dimension_semantics<parallel>, #tpu.dimension_semantics<arbitrary>], iteration_bounds = array<i64: 2, 1>, scalar_prefetch = 0 : i64, scratch_operands = 1 : i64, tpu.core_type = #tpu.core_type<tc>, window_params = [{transform_indices = @transform_0, window_bounds = array<i64: 128, 256>}, {transform_indices = @transform_1, window_bounds = array<i64: 256, 128>}, {pipeline_mode = #tpu.pipeline_mode<synchronous>, transform_indices = @transform_2, window_bounds = array<i64: 128, 128>}, {transform_indices = @transform_3, window_bounds = array<i64: 128, 1>}, {pipeline_mode = #tpu.pipeline_mode<synchronous>, transform_indices = @transform_4, window_bounds = array<i64: 1, 128>}, {transform_indices = @transform_5, window_bounds = array<i64: 128, 128>}]} {
    %c0_i32 = arith.constant 0 : i32
    %0 = arith.cmpi eq, %arg1, %c0_i32 : i32
    %1 = arith.extui %0 : i1 to i32
    %c0_i32_0 = arith.constant 0 : i32
    %2 = arith.cmpi ne, %1, %c0_i32_0 : i32
    scf.if %2 {
      %cst_10 = arith.constant 0.000000e+00 : f32
      %12 = vector.broadcast %cst_10 : f32 to vector<128x128xf32>
      %c0_11 = arith.constant 0 : index
      %c0_12 = arith.constant 0 : index
      %13 = vector.load %arg8[%c0_11, %c0_12] : memref<128x128xf32, #tpu.memory_space<vmem>>, vector<128x128xf32>
      tpu.vector_store %arg8[%c0_11, %c0_12], %12 {strides = array<i32>} : memref<128x128xf32, #tpu.memory_space<vmem>>, vector<128x128xf32>,
    } else {
    }
    %c0 = arith.constant 0 : index
    %c0_1 = arith.constant 0 : index
    %3 = vector.load %arg8[%c0, %c0_1] : memref<128x128xf32, #tpu.memory_space<vmem>>, vector<128x128xf32>
    %c0_2 = arith.constant 0 : index
    %c0_3 = arith.constant 0 : index
    %4 = vector.load %arg2[%c0_2, %c0_3] : memref<128x256xbf16, #tpu.memory_space<vmem>>, vector<128x256xbf16>
    %c0_4 = arith.constant 0 : index
    %c0_5 = arith.constant 0 : index
    %5 = vector.load %arg3[%c0_4, %c0_5] : memref<256x128xbf16, #tpu.memory_space<vmem>>, vector<256x128xbf16>
    %cst = arith.constant dense<0.000000e+00> : vector<128x128xf32>
    %6 = tpu.matmul %4, %5, %cst {dimension_numbers = #tpu.dot_dimension_numbers<[1], [0], [0], [1], [0, 0, 1, 1], [], []>} : vector<128x256xbf16>, vector<256x128xbf16>, vector<128x128xf32> -> vector<128x128xf32>
    %7 = arith.addf %3, %6 : vector<128x128xf32>
    %c0_6 = arith.constant 0 : index
    %c0_7 = arith.constant 0 : index
    %8 = vector.load %arg8[%c0_6, %c0_7] : memref<128x128xf32, #tpu.memory_space<vmem>>, vector<128x128xf32>
    tpu.vector_store %arg8[%c0_6, %c0_7], %7 {strides = array<i32>} : memref<128x128xf32, #tpu.memory_space<vmem>>, vector<128x128xf32>,
    %c0_i32_8 = arith.constant 0 : i32
    %9 = arith.cmpi eq, %arg1, %c0_i32_8 : i32
    %10 = arith.extui %9 : i1 to i32
    %c0_i32_9 = arith.constant 0 : i32
    %11 = arith.cmpi ne, %10, %c0_i32_9 : i32
    scf.if %11 {
      %c0_10 = arith.constant 0 : index
      %c0_11 = arith.constant 0 : index
      %12 = vector.load %arg8[%c0_10, %c0_11] : memref<128x128xf32, #tpu.memory_space<vmem>>, vector<128x128xf32>
      %c0_12 = arith.constant 0 : index
      %c0_13 = arith.constant 0 : index
      %13 = vector.load %arg5[%c0_12, %c0_13] : memref<128x1xf32, #tpu.memory_space<vmem>>, vector<128x1xf32>
      %c0_14 = arith.constant 0 : index
      %c0_15 = arith.constant 0 : index
      %14 = vector.load %arg4[%c0_14, %c0_15] : memref<128x128xbf16, #tpu.memory_space<vmem>>, vector<128x128xbf16>
      %15 = vector.broadcast %13 : vector<128x1xf32> to vector<128x128xf32>
      %16 = arith.mulf %12, %15 : vector<128x128xf32>
      %17 = arith.truncf %16 : vector<128x128xf32> to vector<128x128xbf16>
      %cst_16 = arith.constant dense<0.000000e+00> : vector<128x128xf32>
      %18 = tpu.matmul %17, %14, %cst_16 {dimension_numbers = #tpu.dot_dimension_numbers<[1], [0], [0], [1], [0, 0, 1, 1], [], []>} : vector<128x128xbf16>, vector<128x128xbf16>, vector<128x128xf32> -> vector<128x128xf32>
      %c0_17 = arith.constant 0 : index
      %c0_18 = arith.constant 0 : index
      %19 = vector.load %arg6[%c0_17, %c0_18] : memref<1x128xf32, #tpu.memory_space<vmem>>, vector<1x128xf32>
      %20 = vector.broadcast %19 : vector<1x128xf32> to vector<128x128xf32>
      %21 = arith.addf %18, %20 : vector<128x128xf32>
      %c0_19 = arith.constant 0 : index
      %c0_20 = arith.constant 0 : index
      %22 = vector.load %arg7[%c0_19, %c0_20] : memref<128x128xf32, #tpu.memory_space<vmem>>, vector<128x128xf32>
      tpu.vector_store %arg7[%c0_19, %c0_20], %21 {strides = array<i32>} : memref<128x128xf32, #tpu.memory_space<vmem>>, vector<128x128xf32>,
    } else {
    }
    return
  }
  func.func @transform_0(%arg0: i32, %arg1: i32) -> (i32, i32) {
    %c0_i32 = arith.constant 0 : i32
    return %arg0, %arg1 : i32, i32
  }
  func.func @transform_1(%arg0: i32, %arg1: i32) -> (i32, i32) {
    %c0_i32 = arith.constant 0 : i32
    %c0_i32_0 = arith.constant 0 : i32
    return %arg1, %c0_i32 : i32, i32
  }
  func.func @transform_2(%arg0: i32, %arg1: i32) -> (i32, i32) {
    %c0_i32 = arith.constant 0 : i32
    %c0_i32_0 = arith.constant 0 : i32
    %c0_i32_1 = arith.constant 0 : i32
    return %c0_i32, %c0_i32_0 : i32, i32
  }
  func.func @transform_3(%arg0: i32, %arg1: i32) -> (i32, i32) {
    %c0_i32 = arith.constant 0 : i32
    %c0_i32_0 = arith.constant 0 : i32
    return %arg0, %c0_i32 : i32, i32
  }
  func.func @transform_4(%arg0: i32, %arg1: i32) -> (i32, i32) {
    %c0_i32 = arith.constant 0 : i32
    %c0_i32_0 = arith.constant 0 : i32
    %c0_i32_1 = arith.constant 0 : i32
    return %c0_i32, %c0_i32_0 : i32, i32
  }
  func.func @transform_5(%arg0: i32, %arg1: i32) -> (i32, i32) {
    %c0_i32 = arith.constant 0 : i32
    %c0_i32_0 = arith.constant 0 : i32
    return %arg0, %c0_i32 : i32, i32
  }
}

</mosaic_0001>

<llo_original>
// kernel: tpu_custom_call.1
$region0: #{tpu_custom_call.1}
  #allocation0 [shape = 'u32[]', space=smem, size = 0x4, offset = 0x4, fixed_abs, tag = 'smem constant byte address 0x4 - core index']
  #allocation1 [shape = 'u32[144,128]{1,0:T(1,128)}', space=vmem, size = 0x12000, scoped, tag = 'internal scratch']
  #allocation2 [shape = 'f32[128,128]{1,0:T(8,128)}', space=vmem, size = 0x10000, scoped, tag = 'scratch operand']
  %s0 = inlined_call_operand.vmem [shape: bf16[256,256], index: 0, kind: input, shape index: {}]
  %s1 = inlined_call_operand.hbm [shape: bf16[256,128], index: 1, kind: input, shape index: {}]
  %s2 = inlined_call_operand.hbm [shape: bf16[128,128], index: 2, kind: input, shape index: {}]
  %s3 = inlined_call_operand.vmem [shape: f32[256,1], index: 3, kind: input, shape index: {}]
  %s4 = inlined_call_operand.vmem [shape: f32[1,128], index: 4, kind: input, shape index: {}]
  %s5 = inlined_call_operand.hbm [shape: f32[256,128], index: 5, kind: output, shape index: {}]
  %s6 = sld [smem:[#allocation0]]
  $region69: #{tpu_custom_call.1} parent=0
    _
  %s8 = ssub.s32 1, %s6
  %s9 = scalar_select 0, %s8, %s6
  $region1: #{tpu_custom_call.1} parent=0
    #allocation3 [shape = 'u8[65536]{0}', space=vmem, size = 0x10000, scoped, tag = 'input window, operand 1, single buffered']
    #allocation4 [shape = 's32[2]{0}', space=sflag, size = 0x8, scoped, tag = 'scoped memory for tpu_custom_call.1']
    #allocation5 [shape = 's32[2]{0}', space=sflag, size = 0x8, scoped, tag = 'scoped memory for tpu_custom_call.1']
    #allocation6 [shape = 'u8[32768]{0}', space=vmem, size = 0x8000, scoped, tag = 'input window, operand 2, single buffered']
    #allocation7 [shape = 's32[1]{0}', space=sflag, size = 0x4, scoped, tag = 'scoped memory for tpu_custom_call.1']
    #allocation8 [shape = 'u8[131072]{0}', space=vmem, size = 0x20000, scoped, tag = 'output window, operand 0']
    %10 = vsyncpa [#allocation4], 0
    %11 = vsyncpa [#allocation7], 0
    %12 = vsyncpa [#allocation5], 0
    %s13 = scalar_lea.sflag [#allocation5], 1
    %14 = vsyncpa %s13, 0
    loop: start=0, step=1, limit=4
    $region2: #{tpu_custom_call.1} parent=1 // loop_pre_header
      _
    $region3: #{tpu_custom_call.1} parent=1 // loop_header
      %s16 = sphi 0, %s20
      %p17 = scmp.ge.s32.totalorder %s16, 4
      %s23 = sphi 0, %s35
      %s24 = sphi 0, %s31
      %s25 = sphi 0, %s23
      %s26 = sphi 0, %s24
      %s27 = sphi 0, %s25
      %s28 = sphi 0, %s26
      %s40 = sphi 0, %s42
      %s43 = sphi 0, %s40
      %s44 = sphi 0, %s43
      %s60 = sphi 0, %s44
      %s66 = sphi 0, %s68
      %s69 = sphi 0, %s66
      %s70 = sphi 0, %s69
      %s86 = sphi 0, %s70
      %s90 = sphi 0, %s90
      %s92 = sphi 0, %s90
      %s93 = sphi 0, %s92
      %s107 = sphi 0, %s93
      %s113 = sphi 0, %s115
      %s116 = sphi 0, %s113
      %s117 = sphi 0, %s116
      %s133 = sphi 0, %s117
      %s137 = sphi 0, %s137
      %s139 = sphi 0, %s137
      %s140 = sphi 0, %s139
      %s154 = sphi 0, %s140
      %s160 = sphi 0, %s162
      %s163 = sphi 0, %s160
      %s164 = sphi 0, %s163
      %s180 = sphi 0, %s164
    $region4: #{tpu_custom_call.1} parent=1 // loop_header_branch
      %19 = sbr.rel (%p17) target = $region8
    $region5: #{tpu_custom_call.1} parent=1 // loop_body
      %s21 = ssub.s32 %s16, 1
      %s22 = ssub.s32 %s16, 2
      %s29 = sadd.s32 1, %s24
      %p30 = scmp.ge.s32.totalorder %s29, 1
      %s31 = scalar_select %p30, 0, %s29
      %s32 = sadd.s32 1, %s23
      %s33 = scalar_select %p30, %s32, %s23
      %p34 = scmp.ge.s32.totalorder %s33, 2
      %s35 = scalar_select %p34, 0, %s33
      %s36 = ssub.s32 %s23, %s35
      %s37 = ssub.s32 %s24, %s31
      %s38 = sor.u32 %s36, %s37
      %p39 = scmp.eq.s32.totalorder %s38, 0
      %s41 = sadd.s32 %s40, 1
      %s42 = scalar_select %p39, %s40, %s41
      %p45 = pneg %p39
      %p46 = scmp.eq.s32.totalorder %s16, 1
      %p47 = por %p45, %p46
      %p48 = scmp.ne.s32.totalorder %s40, %s43
      %p49 = scmp.eq.s32.totalorder %s16, 0
      %p50 = por %p48, %p49
      %p51 = scmp.ne.s32.totalorder %s40, %s43
      %p52 = scmp.eq.s32.totalorder %s21, 1
      %p53 = por %p51, %p52
      %p54 = scmp.ne.s32.totalorder %s43, %s44
      %p55 = scmp.eq.s32.totalorder %s21, 0
      %p56 = por %p54, %p55
      %p57 = scmp.ne.s32.totalorder %s43, %s44
      %p58 = scmp.eq.s32.totalorder %s22, 1
      %p59 = por %p57, %p58
      %p61 = scmp.ne.s32.totalorder %s44, %s60
      %p62 = scmp.eq.s32.totalorder %s22, 0
      %p63 = por %p61, %p62
      %s64 = ssub.s32 %s24, %s31
      %p65 = scmp.eq.s32.totalorder %s64, 0
      %s67 = sadd.s32 %s66, 1
      %s68 = scalar_select %p65, %s66, %s67
      %p71 = pneg %p65
      %p72 = scmp.eq.s32.totalorder %s16, 1
      %p73 = por %p71, %p72
      %p74 = scmp.ne.s32.totalorder %s66, %s69
      %p75 = scmp.eq.s32.totalorder %s16, 0
      %p76 = por %p74, %p75
      %p77 = scmp.ne.s32.totalorder %s66, %s69
      %p78 = scmp.eq.s32.totalorder %s21, 1
      %p79 = por %p77, %p78
      %p80 = scmp.ne.s32.totalorder %s69, %s70
      %p81 = scmp.eq.s32.totalorder %s21, 0
      %p82 = por %p80, %p81
      %p83 = scmp.ne.s32.totalorder %s69, %s70
      %p84 = scmp.eq.s32.totalorder %s22, 1
      %p85 = por %p83, %p84
      %p87 = scmp.ne.s32.totalorder %s70, %s86
      %p88 = scmp.eq.s32.totalorder %s22, 0
      %p89 = por %p87, %p88
      %s91 = sadd.s32 %s90, 1
      %p94 = scmp.eq.s32.totalorder %s16, 1
      %p95 = scmp.ne.s32.totalorder %s90, %s92
      %p96 = scmp.eq.s32.totalorder %s16, 0
      %p97 = por %p95, %p96
      %p98 = scmp.ne.s32.totalorder %s90, %s92
      %p99 = scmp.eq.s32.totalorder %s21, 1
      %p100 = por %p98, %p99
      %p101 = scmp.ne.s32.totalorder %s92, %s93
      %p102 = scmp.eq.s32.totalorder %s21, 0
      %p103 = por %p101, %p102
      %p104 = scmp.ne.s32.totalorder %s92, %s93
      %p105 = scmp.eq.s32.totalorder %s22, 1
      %p106 = por %p104, %p105
      %p108 = scmp.ne.s32.totalorder %s93, %s107
      %p109 = scmp.eq.s32.totalorder %s22, 0
      %p110 = por %p108, %p109
      %s111 = ssub.s32 %s23, %s35
      %p112 = scmp.eq.s32.totalorder %s111, 0
      %s114 = sadd.s32 %s113, 1
      %s115 = scalar_select %p112, %s113, %s114
      %p118 = pneg %p112
      %p119 = scmp.eq.s32.totalorder %s16, 1
      %p120 = por %p118, %p119
      %p121 = scmp.ne.s32.totalorder %s113, %s116
      %p122 = scmp.eq.s32.totalorder %s16, 0
      %p123 = por %p121, %p122
      %p124 = scmp.ne.s32.totalorder %s113, %s116
      %p125 = scmp.eq.s32.totalorder %s21, 1
      %p126 = por %p124, %p125
      %p127 = scmp.ne.s32.totalorder %s116, %s117
      %p128 = scmp.eq.s32.totalorder %s21, 0
      %p129 = por %p127, %p128
      %p130 = scmp.ne.s32.totalorder %s116, %s117
      %p131 = scmp.eq.s32.totalorder %s22, 1
      %p132 = por %p130, %p131
      %p134 = scmp.ne.s32.totalorder %s117, %s133
      %p135 = scmp.eq.s32.totalorder %s22, 0
      %p136 = por %p134, %p135
      %s138 = sadd.s32 %s137, 1
      %p141 = scmp.eq.s32.totalorder %s16, 1
      %p142 = scmp.ne.s32.totalorder %s137, %s139
      %p143 = scmp.eq.s32.totalorder %s16, 0
      %p144 = por %p142, %p143
      %p145 = scmp.ne.s32.totalorder %s137, %s139
      %p146 = scmp.eq.s32.totalorder %s21, 1
      %p147 = por %p145, %p146
      %p148 = scmp.ne.s32.totalorder %s139, %s140
      %p149 = scmp.eq.s32.totalorder %s21, 0
      %p150 = por %p148, %p149
      %p151 = scmp.ne.s32.totalorder %s139, %s140
      %p152 = scmp.eq.s32.totalorder %s22, 1
      %p153 = por %p151, %p152
      %p155 = scmp.ne.s32.totalorder %s140, %s154
      %p156 = scmp.eq.s32.totalorder %s22, 0
      %p157 = por %p155, %p156
      %s158 = ssub.s32 %s23, %s35
      %p159 = scmp.eq.s32.totalorder %s158, 0
      %s161 = sadd.s32 %s160, 1
      %s162 = scalar_select %p159, %s160, %s161
      %p165 = pneg %p159
      %p166 = scmp.eq.s32.totalorder %s16, 1
      %p167 = por %p165, %p166
      %p168 = scmp.ne.s32.totalorder %s160, %s163
      %p169 = scmp.eq.s32.totalorder %s16, 0
      %p170 = por %p168, %p169
      %p171 = scmp.ne.s32.totalorder %s160, %s163
      %p172 = scmp.eq.s32.totalorder %s21, 1
      %p173 = por %p171, %p172
      %p174 = scmp.ne.s32.totalorder %s163, %s164
      %p175 = scmp.eq.s32.totalorder %s21, 0
      %p176 = por %p174, %p175
      %p177 = scmp.ne.s32.totalorder %s163, %s164
      %p178 = scmp.eq.s32.totalorder %s22, 1
      %p179 = por %p177, %p178
      %p181 = scmp.ne.s32.totalorder %s164, %s180
      %p182 = scmp.eq.s32.totalorder %s22, 0
      %p183 = por %p181, %p182
      %p184 = scmp.le.s32.totalorder 1, %s16
      %p185 = scmp.lt.s32.totalorder %s16, 3
      %p186 = pnand %p184, %p185
      %p187 = pneg %p186
      // Predicated region
      $region9: #{tpu_custom_call.1} parent=5 // pred_check
        _
      $region10: #{tpu_custom_call.1} parent=5 // pred_check_branch
        %189 = sbr.rel (%p186) target = $region12
      $region11: #{tpu_custom_call.1} parent=5 // pred_region
        %s190 = ssub.s32 %s16, 1
        // Predicated region
        $region13: #{tpu_custom_call.1} parent=11 // pred_check
          %p191 = pneg %p82
        $region14: #{tpu_custom_call.1} parent=11 // pred_check_branch
          %193 = sbr.rel (%p191) target = $region16
        $region15: #{tpu_custom_call.1} parent=11 // pred_region
          %s194 = smul.u32 32, %s26
          %s196 = ssub.s32 2048, 2048
          %197 = vsyncadd [#allocation4], %s196
          %s198 = smul.addr %s194, 64
          %s199 = scalar_lea.hbm %s1, %s198
          %s200 = sshll.u32 [#allocation3], 4
          %s201 = int_to_ptr.vmem [resolvable:$true] %s200
          %206 = dma.hbm_to_vmem [thread:$0]  %s199, 2048, %s201, [#allocation4], 64, 64, 4
        $region16: #{tpu_custom_call.1} parent=11 // pred_fallthru
          _
        // Predicated region
        $region17: #{tpu_custom_call.1} parent=11 // pred_check
          %p207 = pneg %p103
        $region18: #{tpu_custom_call.1} parent=11 // pred_check_branch
          %209 = sbr.rel (%p207) target = $region20
        $region19: #{tpu_custom_call.1} parent=11 // pred_region
          %s211 = ssub.s32 1024, 1024
          %212 = vsyncadd [#allocation7], %s211
          %s213 = sshll.u32 [#allocation6], 4
          %s214 = int_to_ptr.vmem [resolvable:$true] %s213
          %219 = dma.hbm_to_vmem [thread:$0]  %s2, 1024, %s214, [#allocation7], 64, 64, 4
        $region20: #{tpu_custom_call.1} parent=11 // pred_fallthru
          _
        // Predicated region
        $region21: #{tpu_custom_call.1} parent=11 // pred_check
          %p220 = pneg %p150
        $region22: #{tpu_custom_call.1} parent=11 // pred_check_branch
          %222 = sbr.rel (%p220) target = $region24
        $region23: #{tpu_custom_call.1} parent=11 // pred_region
          _
        $region24: #{tpu_custom_call.1} parent=11 // pred_fallthru
          _
      $region12: #{tpu_custom_call.1} parent=5 // pred_fallthru
        _
      %p223 = scmp.lt.s32.totalorder %s16, 2
      // Predicated region
      $region25: #{tpu_custom_call.1} parent=5 // pred_check
        %p224 = pneg %p223
      $region26: #{tpu_custom_call.1} parent=5 // pred_check_branch
        %226 = sbr.rel (%p224) target = $region28
      $region27: #{tpu_custom_call.1} parent=5 // pred_region
        // Predicated region
        $region29: #{tpu_custom_call.1} parent=27 // pred_check
          %p227 = pneg %p50
        $region30: #{tpu_custom_call.1} parent=27 // pred_check_branch
          %229 = sbr.rel (%p227) target = $region32
        $region31: #{tpu_custom_call.1} parent=27 // pred_region
          %s230 = smul.u32 16, %s23
          %s231 = smul.u32 2, %s24
          %p232 = scmp.lt.s32.totalorder %s230, 31
          %s233 = scalar_select %p232, %s230, 31
          %p234 = scmp.lt.s32.totalorder %s231, 1
          %s235 = scalar_select %p234, %s231, 1
          %s236 = smul.addr %s233, 2
          %s237 = sadd.s32 %s235, %s236
          %s238 = smul.addr %s237, 4
          %s239 = scalar_lea.vmem %s0, %s238
          %s240 = smul.u32 16, %s23
          %s241 = smul.u32 2, %s24
        $region32: #{tpu_custom_call.1} parent=27 // pred_fallthru
          _
        // Predicated region
        $region33: #{tpu_custom_call.1} parent=27 // pred_check
          %p242 = pneg %p123
        $region34: #{tpu_custom_call.1} parent=27 // pred_check_branch
          %244 = sbr.rel (%p242) target = $region36
        $region35: #{tpu_custom_call.1} parent=27 // pred_region
          %s245 = smul.u32 16, %s23
          %p246 = scmp.lt.s32.totalorder %s245, 31
          %s247 = scalar_select %p246, %s245, 31
          %s248 = smul.addr %s247, 8
          %s249 = scalar_lea.vmem %s3, %s248
          %s250 = smul.u32 16, %s23
        $region36: #{tpu_custom_call.1} parent=27 // pred_fallthru
          _
      $region28: #{tpu_custom_call.1} parent=5 // pred_fallthru
        _
      %p251 = scmp.le.s32.totalorder 1, %s16
      %p252 = scmp.lt.s32.totalorder %s16, 3
      %p253 = pnand %p251, %p252
      %p254 = pneg %p253
      // Predicated region
      $region37: #{tpu_custom_call.1} parent=5 // pred_check
        _
      $region38: #{tpu_custom_call.1} parent=5 // pred_check_branch
        %256 = sbr.rel (%p253) target = $region40
      $region39: #{tpu_custom_call.1} parent=5 // pred_region
        %s257 = ssub.s32 %s16, 1
        // Predicated region
        $region41: #{tpu_custom_call.1} parent=39 // pred_check
          %p258 = pneg %p82
        $region42: #{tpu_custom_call.1} parent=39 // pred_check_branch
          %260 = sbr.rel (%p258) target = $region44
        $region43: #{tpu_custom_call.1} parent=39 // pred_region
          %261 = dma.done [#allocation4], 2048
        $region44: #{tpu_custom_call.1} parent=39 // pred_fallthru
          _
        // Predicated region
        $region45: #{tpu_custom_call.1} parent=39 // pred_check
          %p262 = pneg %p103
        $region46: #{tpu_custom_call.1} parent=39 // pred_check_branch
          %264 = sbr.rel (%p262) target = $region48
        $region47: #{tpu_custom_call.1} parent=39 // pred_region
          %265 = dma.done [#allocation7], 1024
        $region48: #{tpu_custom_call.1} parent=39 // pred_fallthru
          _
        %s266 = smul.u32 16, %s25
        %s267 = smul.u32 2, %s26
        %p268 = scmp.lt.s32.totalorder %s266, 31
        %s269 = scalar_select %p268, %s266, 31
        %p270 = scmp.lt.s32.totalorder %s267, 1
        %s271 = scalar_select %p270, %s267, 1
        %s272 = smul.addr %s269, 2
        %s273 = sadd.s32 %s271, %s272
        %s274 = smul.addr %s273, 4
        %s275 = scalar_lea.vmem %s0, %s274
        %p276 = pneg %p56
        %p277 = pneg %p53
        %p278 = pneg %p82
        %p279 = pneg %p79
        %p280 = pneg %p103
        %p281 = pneg %p100
        %s282 = smul.u32 16, %s25
        %p283 = scmp.lt.s32.totalorder %s282, 31
        %s284 = scalar_select %p283, %s282, 31
        %s285 = smul.addr %s284, 8
        %s286 = scalar_lea.vmem %s3, %s285
        %p287 = pneg %p129
        %p288 = pneg %p126
        %p289 = pneg %p150
        %p290 = pneg %p147
        %p291 = pneg %p176
        %p292 = pneg %p173
        %s293 = sand.u32 %s163, 1
        %s294 = scalar_lea.sflag [#allocation5], %s293
        %s295 = sand.u32 %s163, 1
        %s296 = smul.addr %s295, 128
        %s297 = scalar_lea.vmem [#allocation8], %s296
        %s298 = smul.u32 16, %s25
        %s299 = smul.u32 2, %s26
        %p300 = scmp.lt.s32.totalorder %s298, 31
        %s301 = scalar_select %p300, %s298, 31
        %p302 = scmp.lt.s32.totalorder %s299, 1
        %s303 = scalar_select %p302, %s299, 1
        %s304 = smul.addr %s301, 2
        %s305 = sadd.s32 %s303, %s304
        %s306 = smul.addr %s305, 4
        %s307 = scalar_lea.vmem %s0, %s306
        %s308 = smul.u32 16, %s25
        %s309 = smul.u32 2, %s26
        %s310 = smul.u32 32, %s26
        %s311 = smul.u32 16, %s25
        %p312 = scmp.lt.s32.totalorder %s311, 31
        %s313 = scalar_select %p312, %s311, 31
        %s314 = smul.addr %s313, 8
        %s315 = scalar_lea.vmem %s3, %s314
        %s316 = smul.u32 16, %s25
        %s317 = smul.u32 16, %s25
        %p319 = scmp.eq.s32.totalorder %s26, 0
        // Predicated region
        $region49: #{tpu_custom_call.1} parent=39 // pred_check
          %p320 = pneg %p319
        $region50: #{tpu_custom_call.1} parent=39 // pred_check_branch
          %322 = sbr.rel (%p320) target = $region52
        $region51: #{tpu_custom_call.1} parent=39 // pred_region
          %323 = vst [vmem:[#allocation2] sm:$0xff] 0.0
          %324 = vst [vmem:[#allocation2 + $0x8] sm:$0xff] 0.0
          %325 = vst [vmem:[#allocation2 + $0x10] sm:$0xff] 0.0
          %326 = vst [vmem:[#allocation2 + $0x18] sm:$0xff] 0.0
          %327 = vst [vmem:[#allocation2 + $0x20] sm:$0xff] 0.0
          %328 = vst [vmem:[#allocation2 + $0x28] sm:$0xff] 0.0
          %329 = vst [vmem:[#allocation2 + $0x30] sm:$0xff] 0.0
          %330 = vst [vmem:[#allocation2 + $0x38] sm:$0xff] 0.0
          %331 = vst [vmem:[#allocation2 + $0x40] sm:$0xff] 0.0
          %332 = vst [vmem:[#allocation2 + $0x48] sm:$0xff] 0.0
          %333 = vst [vmem:[#allocation2 + $0x50] sm:$0xff] 0.0
          %334 = vst [vmem:[#allocation2 + $0x58] sm:$0xff] 0.0
          %335 = vst [vmem:[#allocation2 + $0x60] sm:$0xff] 0.0
          %336 = vst [vmem:[#allocation2 + $0x68] sm:$0xff] 0.0
          %337 = vst [vmem:[#allocation2 + $0x70] sm:$0xff] 0.0
          %338 = vst [vmem:[#allocation2 + $0x78] sm:$0xff] 0.0
        $region52: #{tpu_custom_call.1} parent=39 // pred_fallthru
          _
        %v339 = vld [vmem:[#allocation2] sm:$0xff]
        %v340 = vld [vmem:[#allocation2 + $0x8] sm:$0xff]
        %v341 = vld [vmem:[#allocation2 + $0x10] sm:$0xff]
        %v342 = vld [vmem:[#allocation2 + $0x18] sm:$0xff]
        %v343 = vld [vmem:[#allocation2 + $0x20] sm:$0xff]
        %v344 = vld [vmem:[#allocation2 + $0x28] sm:$0xff]
        %v345 = vld [vmem:[#allocation2 + $0x30] sm:$0xff]
        %v346 = vld [vmem:[#allocation2 + $0x38] sm:$0xff]
        %v347 = vld [vmem:[#allocation2 + $0x40] sm:$0xff]
        %v348 = vld [vmem:[#allocation2 + $0x48] sm:$0xff]
        %v349 = vld [vmem:[#allocation2 + $0x50] sm:$0xff]
        %v350 = vld [vmem:[#allocation2 + $0x58] sm:$0xff]
        %v351 = vld [vmem:[#allocation2 + $0x60] sm:$0xff]
        %v352 = vld [vmem:[#allocation2 + $0x68] sm:$0xff]
        %v353 = vld [vmem:[#allocation2 + $0x70] sm:$0xff]
        %v354 = vld [vmem:[#allocation2 + $0x78] sm:$0xff]
        %v355 = vld [vmem:[%s307] sm:$0xff]
        %v356 = vld [vmem:[%s307 + $0x8] sm:$0xff]
        %v357 = vld [vmem:[%s307 + $0x10] sm:$0xff]
        %v358 = vld [vmem:[%s307 + $0x18] sm:$0xff]
        %v359 = vld [vmem:[%s307 + $0x20] sm:$0xff]
        %v360 = vld [vmem:[%s307 + $0x28] sm:$0xff]
        %v361 = vld [vmem:[%s307 + $0x30] sm:$0xff]
        %v362 = vld [vmem:[%s307 + $0x38] sm:$0xff]
        %v363 = vld [vmem:[%s307 + $0x40] sm:$0xff]
        %v364 = vld [vmem:[%s307 + $0x48] sm:$0xff]
        %v365 = vld [vmem:[%s307 + $0x50] sm:$0xff]
        %v366 = vld [vmem:[%s307 + $0x58] sm:$0xff]
        %v367 = vld [vmem:[%s307 + $0x60] sm:$0xff]
        %v368 = vld [vmem:[%s307 + $0x68] sm:$0xff]
        %v369 = vld [vmem:[%s307 + $0x70] sm:$0xff]
        %v370 = vld [vmem:[%s307 + $0x78] sm:$0xff]
        %v371 = vld [vmem:[#allocation3] sm:$0xf]
        %v372 = vld [vmem:[#allocation3 + $0x4] sm:$0xf]
        %v373 = vld [vmem:[#allocation3 + $0x8] sm:$0xf]
        %v374 = vld [vmem:[#allocation3 + $0xc] sm:$0xf]
        %v375 = vld [vmem:[#allocation3 + $0x10] sm:$0xf]
        %v376 = vld [vmem:[#allocation3 + $0x14] sm:$0xf]
        %v377 = vld [vmem:[#allocation3 + $0x18] sm:$0xf]
        %v378 = vld [vmem:[#allocation3 + $0x1c] sm:$0xf]
        %v379 = vld [vmem:[#allocation3 + $0x20] sm:$0xf]
        %v380 = vld [vmem:[#allocation3 + $0x24] sm:$0xf]
        %v381 = vld [vmem:[#allocation3 + $0x28] sm:$0xf]
        %v382 = vld [vmem:[#allocation3 + $0x2c] sm:$0xf]
        %v383 = vld [vmem:[#allocation3 + $0x30] sm:$0xf]
        %v384 = vld [vmem:[#allocation3 + $0x34] sm:$0xf]
        %v385 = vld [vmem:[#allocation3 + $0x38] sm:$0xf]
        %v386 = vld [vmem:[#allocation3 + $0x3c] sm:$0xf]
        %v387 = vld [vmem:[#allocation3 + $0x40] sm:$0xf]
        %v388 = vld [vmem:[#allocation3 + $0x44] sm:$0xf]
        %v389 = vld [vmem:[#allocation3 + $0x48] sm:$0xf]
        %v390 = vld [vmem:[#allocation3 + $0x4c] sm:$0xf]
        %v391 = vld [vmem:[#allocation3 + $0x50] sm:$0xf]
        %v392 = vld [vmem:[#allocation3 + $0x54] sm:$0xf]
        %v393 = vld [vmem:[#allocation3 + $0x58] sm:$0xf]
        %v394 = vld [vmem:[#allocation3 + $0x5c] sm:$0xf]
        %v395 = vld [vmem:[#allocation3 + $0x60] sm:$0xf]
        %v396 = vld [vmem:[#allocation3 + $0x64] sm:$0xf]
        %v397 = vld [vmem:[#allocation3 + $0x68] sm:$0xf]
        %v398 = vld [vmem:[#allocation3 + $0x6c] sm:$0xf]
        %v399 = vld [vmem:[#allocation3 + $0x70] sm:$0xf]
        %v400 = vld [vmem:[#allocation3 + $0x74] sm:$0xf]
        %v401 = vld [vmem:[#allocation3 + $0x78] sm:$0xf]
        %v402 = vld [vmem:[#allocation3 + $0x7c] sm:$0xf]
        %v419 = vunpack.c.l.b16 %v355
        %v420 = vunpack.c.h.b16 %v355
        %v421 = vunpack.c.l.b16 %v356
        %v422 = vunpack.c.h.b16 %v356
        %v423 = vunpack.c.l.b16 %v357
        %v424 = vunpack.c.h.b16 %v357
        %v425 = vunpack.c.l.b16 %v358
        %v426 = vunpack.c.h.b16 %v358
        %v427 = vunpack.c.l.b16 %v359
        %v428 = vunpack.c.h.b16 %v359
        %v429 = vunpack.c.l.b16 %v360
        %v430 = vunpack.c.h.b16 %v360
        %v431 = vunpack.c.l.b16 %v361
        %v432 = vunpack.c.h.b16 %v361
        %v433 = vunpack.c.l.b16 %v362
        %v434 = vunpack.c.h.b16 %v362
        %v435 = vunpack.c.l.b16 %v363
        %v436 = vunpack.c.h.b16 %v363
        %v437 = vunpack.c.l.b16 %v364
        %v438 = vunpack.c.h.b16 %v364
        %v439 = vunpack.c.l.b16 %v365
        %v440 = vunpack.c.h.b16 %v365
        %v441 = vunpack.c.l.b16 %v366
        %v442 = vunpack.c.h.b16 %v366
        %v443 = vunpack.c.l.b16 %v367
        %v444 = vunpack.c.h.b16 %v367
        %v445 = vunpack.c.l.b16 %v368
        %v446 = vunpack.c.h.b16 %v368
        %v447 = vunpack.c.l.b16 %v369
        %v448 = vunpack.c.h.b16 %v369
        %v449 = vunpack.c.l.b16 %v370
        %v450 = vunpack.c.h.b16 %v370
        %v451 = vpack.c.b16 %v421, %v419
        %v452 = vpack.c.b16 %v422, %v420
        %v453 = vpack.c.b16 %v425, %v423
        %v454 = vpack.c.b16 %v426, %v424
        %v455 = vpack.c.b16 %v429, %v427
        %v456 = vpack.c.b16 %v430, %v428
        %v457 = vpack.c.b16 %v433, %v431
        %v458 = vpack.c.b16 %v434, %v432
        %v459 = vpack.c.b16 %v437, %v435
        %v460 = vpack.c.b16 %v438, %v436
        %v461 = vpack.c.b16 %v441, %v439
        %v462 = vpack.c.b16 %v442, %v440
        %v463 = vpack.c.b16 %v445, %v443
        %v464 = vpack.c.b16 %v446, %v444
        %v465 = vpack.c.b16 %v449, %v447
        %v466 = vpack.c.b16 %v450, %v448
        %v515 = vunpack.c.l.b16 %v371
        %v516 = vunpack.c.l.b16 %v372
        %v517 = vunpack.c.l.b16 %v373
        %v518 = vunpack.c.l.b16 %v374
        %v519 = vunpack.c.l.b16 %v375
        %v520 = vunpack.c.l.b16 %v376
        %v521 = vunpack.c.l.b16 %v377
        %v522 = vunpack.c.l.b16 %v378
        %v523 = vunpack.c.l.b16 %v379
        %v524 = vunpack.c.l.b16 %v380
        %v525 = vunpack.c.l.b16 %v381
        %v526 = vunpack.c.l.b16 %v382
        %v527 = vunpack.c.l.b16 %v383
        %v528 = vunpack.c.l.b16 %v384
        %v529 = vunpack.c.l.b16 %v385
        %v530 = vunpack.c.l.b16 %v386
        %v531 = vunpack.c.l.b16 %v387
        %v532 = vunpack.c.l.b16 %v388
        %v533 = vunpack.c.l.b16 %v389
        %v534 = vunpack.c.l.b16 %v390
        %v535 = vunpack.c.l.b16 %v391
        %v536 = vunpack.c.l.b16 %v392
        %v537 = vunpack.c.l.b16 %v393
        %v538 = vunpack.c.l.b16 %v394
        %v539 = vunpack.c.l.b16 %v395
        %v540 = vunpack.c.l.b16 %v396
        %v541 = vunpack.c.l.b16 %v397
        %v542 = vunpack.c.l.b16 %v398
        %v543 = vunpack.c.l.b16 %v399
        %v544 = vunpack.c.l.b16 %v400
        %v545 = vunpack.c.l.b16 %v401
        %v546 = vunpack.c.l.b16 %v402
        %v547 = vpack.c.b16 %v516, %v515
        %v548 = vpack.c.b16 %v518, %v517
        %v549 = vpack.c.b16 %v520, %v519
        %v550 = vpack.c.b16 %v522, %v521
        %v551 = vpack.c.b16 %v524, %v523
        %v552 = vpack.c.b16 %v526, %v525
        %v553 = vpack.c.b16 %v528, %v527
        %v554 = vpack.c.b16 %v530, %v529
        %v555 = vpack.c.b16 %v532, %v531
        %v556 = vpack.c.b16 %v534, %v533
        %v557 = vpack.c.b16 %v536, %v535
        %v558 = vpack.c.b16 %v538, %v537
        %v559 = vpack.c.b16 %v540, %v539
        %v560 = vpack.c.b16 %v542, %v541
        %v561 = vpack.c.b16 %v544, %v543
        %v562 = vpack.c.b16 %v546, %v545
        %579 = vmatprep.subr.bf16.mxu0 0
        %580 = vmatpush1.bf16.msra.mxu0 %v547
        %581 = vmatprep.subr.bf16.mxu0 0
        %582 = vmatpush1.bf16.msra.mxu0 %v548
        %583 = vmatprep.subr.bf16.mxu0 0
        %584 = vmatpush1.bf16.msra.mxu0 %v549
        %585 = vmatprep.subr.bf16.mxu0 0
        %586 = vmatpush1.bf16.msra.mxu0 %v550
        %587 = vmatprep.subr.bf16.mxu0 0
        %588 = vmatpush1.bf16.msra.mxu0 %v551
        %589 = vmatprep.subr.bf16.mxu0 0
        %590 = vmatpush1.bf16.msra.mxu0 %v552
        %591 = vmatprep.subr.bf16.mxu0 0
        %592 = vmatpush1.bf16.msra.mxu0 %v553
        %593 = vmatprep.subr.bf16.mxu0 0
        %594 = vmatpush1.bf16.msra.mxu0 %v554
        %595 = vmatprep.subr.bf16.mxu0 0
        %596 = vmatpush1.bf16.msra.mxu0 %v555
        %597 = vmatprep.subr.bf16.mxu0 0
        %598 = vmatpush1.bf16.msra.mxu0 %v556
        %599 = vmatprep.subr.bf16.mxu0 0
        %600 = vmatpush1.bf16.msra.mxu0 %v557
        %601 = vmatprep.subr.bf16.mxu0 0
        %602 = vmatpush1.bf16.msra.mxu0 %v558
        %603 = vmatprep.subr.bf16.mxu0 0
        %604 = vmatpush1.bf16.msra.mxu0 %v559
        %605 = vmatprep.subr.bf16.mxu0 0
        %606 = vmatpush1.bf16.msra.mxu0 %v560
        %607 = vmatprep.subr.bf16.mxu0 0
        %608 = vmatpush1.bf16.msra.mxu0 %v561
        %609 = vmatprep.subr.bf16.mxu0 0
        %610 = vmatpush1.bf16.msra.mxu0 %v562
        %611 = vmatprep.mubr.bf16.mxu0 %v452
        %612 = vmatmul.mubr.bf16.gmra.mrb[0].mxu0 %v451
        %v613 = vpop.f32.mrb[0].mxu0
        %v614 = vadd.f32 0.0, %v613
        %v615 = vpop.f32.mrb[0].mxu0
        %v616 = vpop.f32.mrb[0].mxu0
        %v617 = vadd.f32 0.0, %v616
        %v618 = vpop.f32.mrb[0].mxu0
        %619 = vmatprep.mubr.bf16.mxu0 %v454
        %620 = vmatmul.mubr.bf16.gmra.mrb[0].mxu0 %v453
        %v621 = vpop.f32.mrb[0].mxu0
        %v622 = vadd.f32 0.0, %v621
        %v623 = vpop.f32.mrb[0].mxu0
        %v624 = vpop.f32.mrb[0].mxu0
        %v625 = vadd.f32 0.0, %v624
        %v626 = vpop.f32.mrb[0].mxu0
        %627 = vmatprep.mubr.bf16.mxu0 %v456
        %628 = vmatmul.mubr.bf16.gmra.mrb[0].mxu0 %v455
        %v629 = vpop.f32.mrb[0].mxu0
        %v630 = vadd.f32 0.0, %v629
        %v631 = vpop.f32.mrb[0].mxu0
        %v632 = vpop.f32.mrb[0].mxu0
        %v633 = vadd.f32 0.0, %v632
        %v634 = vpop.f32.mrb[0].mxu0
        %635 = vmatprep.mubr.bf16.mxu0 %v458
        %636 = vmatmul.mubr.bf16.gmra.mrb[0].mxu0 %v457
        %v637 = vpop.f32.mrb[0].mxu0
        %v638 = vadd.f32 0.0, %v637
        %v639 = vpop.f32.mrb[0].mxu0
        %v640 = vpop.f32.mrb[0].mxu0
        %v641 = vadd.f32 0.0, %v640
        %v642 = vpop.f32.mrb[0].mxu0
        %643 = vmatprep.mubr.bf16.mxu0 %v460
        %644 = vmatmul.mubr.bf16.gmra.mrb[0].mxu0 %v459
        %v645 = vpop.f32.mrb[0].mxu0
        %v646 = vadd.f32 0.0, %v645
        %v647 = vpop.f32.mrb[0].mxu0
        %v648 = vpop.f32.mrb[0].mxu0
        %v649 = vadd.f32 0.0, %v648
        %v650 = vpop.f32.mrb[0].mxu0
        %651 = vmatprep.mubr.bf16.mxu0 %v462
        %652 = vmatmul.mubr.bf16.gmra.mrb[0].mxu0 %v461
        %v653 = vpop.f32.mrb[0].mxu0
        %v654 = vadd.f32 0.0, %v653
        %v655 = vpop.f32.mrb[0].mxu0
        %v656 = vpop.f32.mrb[0].mxu0
        %v657 = vadd.f32 0.0, %v656
        %v658 = vpop.f32.mrb[0].mxu0
        %659 = vmatprep.mubr.bf16.mxu0 %v464
        %660 = vmatmul.mubr.bf16.gmra.mrb[0].mxu0 %v463
        %v661 = vpop.f32.mrb[0].mxu0
        %v662 = vadd.f32 0.0, %v661
        %v663 = vpop.f32.mrb[0].mxu0
        %v664 = vpop.f32.mrb[0].mxu0
        %v665 = vadd.f32 0.0, %v664
        %v666 = vpop.f32.mrb[0].mxu0
        %667 = vmatprep.mubr.bf16.mxu0 %v466
        %668 = vmatmul.mubr.bf16.gmra.mrb[0].mxu0 %v465
        %v669 = vpop.f32.mrb[0].mxu0
        %v670 = vadd.f32 0.0, %v669
        %v671 = vpop.f32.mrb[0].mxu0
        %v672 = vpop.f32.mrb[0].mxu0
        %v673 = vadd.f32 0.0, %v672
        %v674 = vpop.f32.mrb[0].mxu0
        %675 = vdwg.mxu0
        %v676 = vadd.f32 %v339, %v614
        %v677 = vadd.f32 %v340, %v617
        %v678 = vadd.f32 %v341, %v622
        %v679 = vadd.f32 %v342, %v625
        %v680 = vadd.f32 %v343, %v630
        %v681 = vadd.f32 %v344, %v633
        %v682 = vadd.f32 %v345, %v638
        %v683 = vadd.f32 %v346, %v641
        %v684 = vadd.f32 %v347, %v646
        %v685 = vadd.f32 %v348, %v649
        %v686 = vadd.f32 %v349, %v654
        %v687 = vadd.f32 %v350, %v657
        %v688 = vadd.f32 %v351, %v662
        %v689 = vadd.f32 %v352, %v665
        %v690 = vadd.f32 %v353, %v670
        %v691 = vadd.f32 %v354, %v673
        %692 = vst [vmem:[#allocation2] sm:$0xff] %v676
        %693 = vst [vmem:[#allocation2 + $0x8] sm:$0xff] %v677
        %694 = vst [vmem:[#allocation2 + $0x10] sm:$0xff] %v678
        %695 = vst [vmem:[#allocation2 + $0x18] sm:$0xff] %v679
        %696 = vst [vmem:[#allocation2 + $0x20] sm:$0xff] %v680
        %697 = vst [vmem:[#allocation2 + $0x28] sm:$0xff] %v681
        %698 = vst [vmem:[#allocation2 + $0x30] sm:$0xff] %v682
        %699 = vst [vmem:[#allocation2 + $0x38] sm:$0xff] %v683
        %700 = vst [vmem:[#allocation2 + $0x40] sm:$0xff] %v684
        %701 = vst [vmem:[#allocation2 + $0x48] sm:$0xff] %v685
        %702 = vst [vmem:[#allocation2 + $0x50] sm:$0xff] %v686
        %703 = vst [vmem:[#allocation2 + $0x58] sm:$0xff] %v687
        %704 = vst [vmem:[#allocation2 + $0x60] sm:$0xff] %v688
        %705 = vst [vmem:[#allocation2 + $0x68] sm:$0xff] %v689
        %706 = vst [vmem:[#allocation2 + $0x70] sm:$0xff] %v690
        %707 = vst [vmem:[#allocation2 + $0x78] sm:$0xff] %v691
        // Predicated region
        $region53: #{tpu_custom_call.1} parent=39 // pred_check
          %p708 = pneg %p319
        $region54: #{tpu_custom_call.1} parent=39 // pred_check_branch
          %710 = sbr.rel (%p708) target = $region56
        $region55: #{tpu_custom_call.1} parent=39 // pred_region
          %v711 = vld [vmem:[#allocation2] sm:$0xff]
          %v712 = vld [vmem:[#allocation2 + $0x8] sm:$0xff]
          %v713 = vld [vmem:[#allocation2 + $0x10] sm:$0xff]
          %v714 = vld [vmem:[#allocation2 + $0x18] sm:$0xff]
          %v715 = vld [vmem:[#allocation2 + $0x20] sm:$0xff]
          %v716 = vld [vmem:[#allocation2 + $0x28] sm:$0xff]
          %v717 = vld [vmem:[#allocation2 + $0x30] sm:$0xff]
          %v718 = vld [vmem:[#allocation2 + $0x38] sm:$0xff]
          %v719 = vld [vmem:[#allocation2 + $0x40] sm:$0xff]
          %v720 = vld [vmem:[#allocation2 + $0x48] sm:$0xff]
          %v721 = vld [vmem:[#allocation2 + $0x50] sm:$0xff]
          %v722 = vld [vmem:[#allocation2 + $0x58] sm:$0xff]
          %v723 = vld [vmem:[#allocation2 + $0x60] sm:$0xff]
          %v724 = vld [vmem:[#allocation2 + $0x68] sm:$0xff]
          %v725 = vld [vmem:[#allocation2 + $0x70] sm:$0xff]
          %v726 = vld [vmem:[#allocation2 + $0x78] sm:$0xff]
          %v727 = vld [vmem:[%s315] sm:$0xff]
          %v728 = vld [vmem:[%s315 + $0x8] sm:$0xff]
          %v729 = vld [vmem:[%s315 + $0x10] sm:$0xff]
          %v730 = vld [vmem:[%s315 + $0x18] sm:$0xff]
          %v731 = vld [vmem:[%s315 + $0x20] sm:$0xff]
          %v732 = vld [vmem:[%s315 + $0x28] sm:$0xff]
          %v733 = vld [vmem:[%s315 + $0x30] sm:$0xff]
          %v734 = vld [vmem:[%s315 + $0x38] sm:$0xff]
          %v735 = vld [vmem:[%s315 + $0x40] sm:$0xff]
          %v736 = vld [vmem:[%s315 + $0x48] sm:$0xff]
          %v737 = vld [vmem:[%s315 + $0x50] sm:$0xff]
          %v738 = vld [vmem:[%s315 + $0x58] sm:$0xff]
          %v739 = vld [vmem:[%s315 + $0x60] sm:$0xff]
          %v740 = vld [vmem:[%s315 + $0x68] sm:$0xff]
          %v741 = vld [vmem:[%s315 + $0x70] sm:$0xff]
          %v742 = vld [vmem:[%s315 + $0x78] sm:$0xff]
          %v743 = vld [vmem:[#allocation6] sm:$0xf]
          %v744 = vld [vmem:[#allocation6 + $0x4] sm:$0xf]
          %v745 = vld [vmem:[#allocation6 + $0x8] sm:$0xf]
          %v746 = vld [vmem:[#allocation6 + $0xc] sm:$0xf]
          %v747 = vld [vmem:[#allocation6 + $0x10] sm:$0xf]
          %v748 = vld [vmem:[#allocation6 + $0x14] sm:$0xf]
          %v749 = vld [vmem:[#allocation6 + $0x18] sm:$0xf]
          %v750 = vld [vmem:[#allocation6 + $0x1c] sm:$0xf]
          %v751 = vld [vmem:[#allocation6 + $0x20] sm:$0xf]
          %v752 = vld [vmem:[#allocation6 + $0x24] sm:$0xf]
          %v753 = vld [vmem:[#allocation6 + $0x28] sm:$0xf]
          %v754 = vld [vmem:[#allocation6 + $0x2c] sm:$0xf]
          %v755 = vld [vmem:[#allocation6 + $0x30] sm:$0xf]
          %v756 = vld [vmem:[#allocation6 + $0x34] sm:$0xf]
          %v757 = vld [vmem:[#allocation6 + $0x38] sm:$0xf]
          %v758 = vld [vmem:[#allocation6 + $0x3c] sm:$0xf]
          %760 = vset.pattern.permute.xlu0 0
          %761 = vperm.xlu0 %760, %v727
          %v762 = vpop.permute.xlu0 %761
          %765 = vset.pattern.permute.xlu0 0
          %766 = vperm.xlu0 %765, %v728
          %v767 = vpop.permute.xlu0 %766
          %770 = vset.pattern.permute.xlu0 0
          %771 = vperm.xlu0 %770, %v729
          %v772 = vpop.permute.xlu0 %771
          %775 = vset.pattern.permute.xlu0 0
          %776 = vperm.xlu0 %775, %v730
          %v777 = vpop.permute.xlu0 %776
          %780 = vset.pattern.permute.xlu0 0
          %781 = vperm.xlu0 %780, %v731
          %v782 = vpop.permute.xlu0 %781
          %785 = vset.pattern.permute.xlu0 0
          %786 = vperm.xlu0 %785, %v732
          %v787 = vpop.permute.xlu0 %786
          %790 = vset.pattern.permute.xlu0 0
          %791 = vperm.xlu0 %790, %v733
          %v792 = vpop.permute.xlu0 %791
          %795 = vset.pattern.permute.xlu0 0
          %796 = vperm.xlu0 %795, %v734
          %v797 = vpop.permute.xlu0 %796
          %800 = vset.pattern.permute.xlu0 0
          %801 = vperm.xlu0 %800, %v735
          %v802 = vpop.permute.xlu0 %801
          %805 = vset.pattern.permute.xlu0 0
          %806 = vperm.xlu0 %805, %v736
          %v807 = vpop.permute.xlu0 %806
          %810 = vset.pattern.permute.xlu0 0
          %811 = vperm.xlu0 %810, %v737
          %v812 = vpop.permute.xlu0 %811
          %815 = vset.pattern.permute.xlu0 0
          %816 = vperm.xlu0 %815, %v738
          %v817 = vpop.permute.xlu0 %816
          %820 = vset.pattern.permute.xlu0 0
          %821 = vperm.xlu0 %820, %v739
          %v822 = vpop.permute.xlu0 %821
          %825 = vset.pattern.permute.xlu0 0
          %826 = vperm.xlu0 %825, %v740
          %v827 = vpop.permute.xlu0 %826
          %830 = vset.pattern.permute.xlu0 0
          %831 = vperm.xlu0 %830, %v741
          %v832 = vpop.permute.xlu0 %831
          %835 = vset.pattern.permute.xlu0 0
          %836 = vperm.xlu0 %835, %v742
          %v837 = vpop.permute.xlu0 %836
          %v839 = vmul.f32 %v711, %v762
          %v840 = vmul.f32 %v712, %v767
          %v841 = vmul.f32 %v713, %v772
          %v842 = vmul.f32 %v714, %v777
          %v843 = vmul.f32 %v715, %v782
          %v844 = vmul.f32 %v716, %v787
          %v845 = vmul.f32 %v717, %v792
          %v846 = vmul.f32 %v718, %v797
          %v847 = vmul.f32 %v719, %v802
          %v848 = vmul.f32 %v720, %v807
          %v849 = vmul.f32 %v721, %v812
          %v850 = vmul.f32 %v722, %v817
          %v851 = vmul.f32 %v723, %v822
          %v852 = vmul.f32 %v724, %v827
          %v853 = vmul.f32 %v725, %v832
          %v854 = vmul.f32 %v726, %v837
          %v855 = vpack.c.bf16 %v840, %v839
          %v856 = vpack.c.bf16 %v842, %v841
          %v857 = vpack.c.bf16 %v844, %v843
          %v858 = vpack.c.bf16 %v846, %v845
          %v859 = vpack.c.bf16 %v848, %v847
          %v860 = vpack.c.bf16 %v850, %v849
          %v861 = vpack.c.bf16 %v852, %v851
          %v862 = vpack.c.bf16 %v854, %v853
          %v863 = vld [vmem:[%s4] sm:$0x1]
          %v865 = vlaneseq
          %v866 = vshrl.u32 %v865, 7
          %v867 = vsub.s32 0, %v866
          %v868 = vrot.slane %v863, %v867
          %v886 = vunpack.c.l.b16 %v743
          %v887 = vunpack.c.l.b16 %v744
          %v888 = vunpack.c.l.b16 %v745
          %v889 = vunpack.c.l.b16 %v746
          %v890 = vunpack.c.l.b16 %v747
          %v891 = vunpack.c.l.b16 %v748
          %v892 = vunpack.c.l.b16 %v749
          %v893 = vunpack.c.l.b16 %v750
          %v894 = vunpack.c.l.b16 %v751
          %v895 = vunpack.c.l.b16 %v752
          %v896 = vunpack.c.l.b16 %v753
          %v897 = vunpack.c.l.b16 %v754
          %v898 = vunpack.c.l.b16 %v755
          %v899 = vunpack.c.l.b16 %v756
          %v900 = vunpack.c.l.b16 %v757
          %v901 = vunpack.c.l.b16 %v758
          %v902 = vpack.c.b16 %v887, %v886
          %v903 = vpack.c.b16 %v889, %v888
          %v904 = vpack.c.b16 %v891, %v890
          %v905 = vpack.c.b16 %v893, %v892
          %v906 = vpack.c.b16 %v895, %v894
          %v907 = vpack.c.b16 %v897, %v896
          %v908 = vpack.c.b16 %v899, %v898
          %v909 = vpack.c.b16 %v901, %v900
          %918 = vmatprep.subr.bf16.mxu0 0
          %919 = vmatpush1.bf16.msra.mxu0 %v902
          %920 = vmatprep.subr.bf16.mxu0 0
          %921 = vmatpush1.bf16.msra.mxu0 %v903
          %922 = vmatprep.subr.bf16.mxu0 0
          %923 = vmatpush1.bf16.msra.mxu0 %v904
          %924 = vmatprep.subr.bf16.mxu0 0
          %925 = vmatpush1.bf16.msra.mxu0 %v905
          %926 = vmatprep.subr.bf16.mxu0 0
          %927 = vmatpush1.bf16.msra.mxu0 %v906
          %928 = vmatprep.subr.bf16.mxu0 0
          %929 = vmatpush1.bf16.msra.mxu0 %v907
          %930 = vmatprep.subr.bf16.mxu0 0
          %931 = vmatpush1.bf16.msra.mxu0 %v908
          %932 = vmatprep.subr.bf16.mxu0 0
          %933 = vmatpush1.bf16.msra.mxu0 %v909
          %934 = vmatprep.subr.bf16.mxu0 0
          %935 = vmatpush1.bf16.msra.mxu0 0
          %936 = vmatprep.subr.bf16.mxu0 0
          %937 = vmatpush1.bf16.msra.mxu0 0
          %938 = vmatprep.subr.bf16.mxu0 0
          %939 = vmatpush1.bf16.msra.mxu0 0
          %940 = vmatprep.subr.bf16.mxu0 0
          %941 = vmatpush1.bf16.msra.mxu0 0
          %942 = vmatprep.subr.bf16.mxu0 0
          %943 = vmatpush1.bf16.msra.mxu0 0
          %944 = vmatprep.subr.bf16.mxu0 0
          %945 = vmatpush1.bf16.msra.mxu0 0
          %946 = vmatprep.subr.bf16.mxu0 0
          %947 = vmatpush1.bf16.msra.mxu0 0
          %948 = vmatprep.subr.bf16.mxu0 0
          %949 = vmatpush1.bf16.msra.mxu0 0
          %950 = vmatprep.mubr.bf16.mxu0 0
          %951 = vmatmul.mubr.bf16.gmra.mrb[0].mxu0 %v855
          %v952 = vpop.f32.mrb[0].mxu0
          %v953 = vadd.f32 %v868, %v952
          %v954 = vpop.f32.mrb[0].mxu0
          %v955 = vpop.f32.mrb[0].mxu0
          %v956 = vadd.f32 %v868, %v955
          %v957 = vpop.f32.mrb[0].mxu0
          %958 = vmatprep.mubr.bf16.mxu0 0
          %959 = vmatmul.mubr.bf16.gmra.mrb[0].mxu0 %v856
          %v960 = vpop.f32.mrb[0].mxu0
          %v961 = vadd.f32 %v868, %v960
          %v962 = vpop.f32.mrb[0].mxu0
          %v963 = vpop.f32.mrb[0].mxu0
          %v964 = vadd.f32 %v868, %v963
          %v965 = vpop.f32.mrb[0].mxu0
          %966 = vmatprep.mubr.bf16.mxu0 0
          %967 = vmatmul.mubr.bf16.gmra.mrb[0].mxu0 %v857
          %v968 = vpop.f32.mrb[0].mxu0
          %v969 = vadd.f32 %v868, %v968
          %v970 = vpop.f32.mrb[0].mxu0
          %v971 = vpop.f32.mrb[0].mxu0
          %v972 = vadd.f32 %v868, %v971
          %v973 = vpop.f32.mrb[0].mxu0
          %974 = vmatprep.mubr.bf16.mxu0 0
          %975 = vmatmul.mubr.bf16.gmra.mrb[0].mxu0 %v858
          %v976 = vpop.f32.mrb[0].mxu0
          %v977 = vadd.f32 %v868, %v976
          %v978 = vpop.f32.mrb[0].mxu0
          %v979 = vpop.f32.mrb[0].mxu0
          %v980 = vadd.f32 %v868, %v979
          %v981 = vpop.f32.mrb[0].mxu0
          %982 = vmatprep.mubr.bf16.mxu0 0
          %983 = vmatmul.mubr.bf16.gmra.mrb[0].mxu0 %v859
          %v984 = vpop.f32.mrb[0].mxu0
          %v985 = vadd.f32 %v868, %v984
          %v986 = vpop.f32.mrb[0].mxu0
          %v987 = vpop.f32.mrb[0].mxu0
          %v988 = vadd.f32 %v868, %v987
          %v989 = vpop.f32.mrb[0].mxu0
          %990 = vmatprep.mubr.bf16.mxu0 0
          %991 = vmatmul.mubr.bf16.gmra.mrb[0].mxu0 %v860
          %v992 = vpop.f32.mrb[0].mxu0
          %v993 = vadd.f32 %v868, %v992
          %v994 = vpop.f32.mrb[0].mxu0
          %v995 = vpop.f32.mrb[0].mxu0
          %v996 = vadd.f32 %v868, %v995
          %v997 = vpop.f32.mrb[0].mxu0
          %998 = vmatprep.mubr.bf16.mxu0 0
          %999 = vmatmul.mubr.bf16.gmra.mrb[0].mxu0 %v861
          %v1000 = vpop.f32.mrb[0].mxu0
          %v1001 = vadd.f32 %v868, %v1000
          %v1002 = vpop.f32.mrb[0].mxu0
          %v1003 = vpop.f32.mrb[0].mxu0
          %v1004 = vadd.f32 %v868, %v1003
          %v1005 = vpop.f32.mrb[0].mxu0
          %1006 = vmatprep.mubr.bf16.mxu0 0
          %1007 = vmatmul.mubr.bf16.gmra.mrb[0].mxu0 %v862
          %v1008 = vpop.f32.mrb[0].mxu0
          %v1009 = vadd.f32 %v868, %v1008
          %v1010 = vpop.f32.mrb[0].mxu0
          %v1011 = vpop.f32.mrb[0].mxu0
          %v1012 = vadd.f32 %v868, %v1011
          %v1013 = vpop.f32.mrb[0].mxu0
          %1014 = vdwg.mxu0
          %1015 = vst [vmem:[%s297] sm:$0xff] %v953
          %1016 = vst [vmem:[%s297 + $0x8] sm:$0xff] %v956
          %1017 = vst [vmem:[%s297 + $0x10] sm:$0xff] %v961
          %1018 = vst [vmem:[%s297 + $0x18] sm:$0xff] %v964
          %1019 = vst [vmem:[%s297 + $0x20] sm:$0xff] %v969
          %1020 = vst [vmem:[%s297 + $0x28] sm:$0xff] %v972
          %1021 = vst [vmem:[%s297 + $0x30] sm:$0xff] %v977
          %1022 = vst [vmem:[%s297 + $0x38] sm:$0xff] %v980
          %1023 = vst [vmem:[%s297 + $0x40] sm:$0xff] %v985
          %1024 = vst [vmem:[%s297 + $0x48] sm:$0xff] %v988
          %1025 = vst [vmem:[%s297 + $0x50] sm:$0xff] %v993
          %1026 = vst [vmem:[%s297 + $0x58] sm:$0xff] %v996
          %1027 = vst [vmem:[%s297 + $0x60] sm:$0xff] %v1001
          %1028 = vst [vmem:[%s297 + $0x68] sm:$0xff] %v1004
          %1029 = vst [vmem:[%s297 + $0x70] sm:$0xff] %v1009
          %1030 = vst [vmem:[%s297 + $0x78] sm:$0xff] %v1012
        $region56: #{tpu_custom_call.1} parent=39 // pred_fallthru
          _
        %s1031 = sand.u32 %s163, 1
        %s1032 = scalar_lea.sflag [#allocation5], %s1031
        %s1033 = sand.u32 %s163, 1
        %s1034 = smul.addr %s1033, 128
        %s1035 = scalar_lea.vmem [#allocation8], %s1034
        // Predicated region
        $region57: #{tpu_custom_call.1} parent=39 // pred_check
          %p1036 = pneg %p173
        $region58: #{tpu_custom_call.1} parent=39 // pred_check_branch
          %1038 = sbr.rel (%p1036) target = $region60
        $region59: #{tpu_custom_call.1} parent=39 // pred_region
          %s1039 = smul.u32 16, %s25
          %s1041 = ssub.s32 2048, 2048
          %1042 = vsyncadd %s1032, %s1041
          %s1043 = smul.addr %s1039, 128
          %s1044 = scalar_lea.hbm %s5, %s1043
          %s1045 = sshll.u32 %s1035, 4
          %s1046 = int_to_ptr.vmem [resolvable:$true] %s1045
          %1051 = dma.vmem_to_hbm [thread:$0]  %s1046, 2048, %s1044, %s1032, 128, 128, 8
        $region60: #{tpu_custom_call.1} parent=39 // pred_fallthru
          _
      $region40: #{tpu_custom_call.1} parent=5 // pred_fallthru
        _
      %p1052 = scmp.le.s32.totalorder 2, %s16
      // Predicated region
      $region61: #{tpu_custom_call.1} parent=5 // pred_check
        %p1053 = pneg %p1052
      $region62: #{tpu_custom_call.1} parent=5 // pred_check_branch
        %1055 = sbr.rel (%p1053) target = $region64
      $region63: #{tpu_custom_call.1} parent=5 // pred_region
        %s1056 = ssub.s32 %s16, 2
        // Predicated region
        $region65: #{tpu_custom_call.1} parent=63 // pred_check
          %p1057 = pneg %p179
        $region66: #{tpu_custom_call.1} parent=63 // pred_check_branch
          %1059 = sbr.rel (%p1057) target = $region68
        $region67: #{tpu_custom_call.1} parent=63 // pred_region
          %s1060 = sand.u32 %s164, 1
          %s1061 = scalar_lea.sflag [#allocation5], %s1060
          %s1062 = sand.u32 %s164, 1
          %s1063 = smul.addr %s1062, 128
          %s1064 = scalar_lea.vmem [#allocation8], %s1063
          %1065 = dma.done %s1061, 2048
        $region68: #{tpu_custom_call.1} parent=63 // pred_fallthru
          _
      $region64: #{tpu_custom_call.1} parent=5 // pred_fallthru
        _
    $region6: #{tpu_custom_call.1} parent=1 // loop_footer
      %s20 = sadd.s32 1, %s16
    $region7: #{tpu_custom_call.1} parent=1 // loop_footer_branch
      %15 = sbr.rel target = $region3
    $region8: #{tpu_custom_call.1} parent=1 // loop_exit
      _
    %1066 = vsyncpa [#allocation4], 1
    %s1067 = scalar_lea.sflag [#allocation4], 1
    %1068 = vsyncpa %s1067, 1
    %1069 = vsyncpa [#allocation7], 1
    %1070 = vsyncpa [#allocation5], 1
    %s1071 = scalar_lea.sflag [#allocation5], 1
    %1072 = vsyncpa %s1071, 1

</llo_original>
